<compile_context>
chip_gen: v7x
topology: tpu7x:2x2x1
jax: 0.10.0
libtpu: 0.0.40
codegen_flags: <defaults>
</compile_context>

<pallas_src>
import functools

import jax
import jax.numpy as jnp
from jax.experimental import pallas as pl
from jax.experimental.pallas import tpu as pltpu


def _round_up(v: int, m: int) -> int:
    return (v + m - 1) // m * m


def _lm_head_kernel(x_ref, w_ref, b_ref, o_ref, *, precision):
    # x_ref: (TM, D), w_ref: (TV, D) native torch layout, b_ref: (1, TV) f32,
    # o_ref: (TM, TV).  Full contraction dim per block -> single MXU dot with
    # f32 accumulation; transposed contraction done on-chip (no HBM copy).
    y = jax.lax.dot_general(
        x_ref[...],
        w_ref[...],
        dimension_numbers=(((1,), (1,)), ((), ())),   # contract D of both
        preferred_element_type=jnp.float32,
        precision=precision,
    )
    o_ref[...] = (y + b_ref[...]).astype(o_ref.dtype)


@functools.partial(jax.jit, static_argnames=("tm", "tv", "precision"))
def next_token_head(x, weight, bias, *, tm: int = 256, tv: int = 512,
                    precision=None):
    """x: (B, S, D); weight: (V, D) torch layout; bias: (V,). Returns (B, S, V)."""
    B, S, D = x.shape
    V, D2 = weight.shape
    assert D2 == D, "weight must be (vocab_size, embedding_dim)"

    M = B * S
    x2 = x.reshape(M, D)                       # flatten tokens into rows
    b2 = bias.reshape(1, V).astype(jnp.float32)  # tiny; f32 bias add epilogue

    # Clamp tiles to the problem size while keeping sublane(8)/lane(128)
    # alignment.  No array padding: Pallas masks ragged edge blocks.
    tm_eff = min(tm, _round_up(M, 8))
    tv_eff = min(tv, _round_up(V, 128))
    gm = pl.cdiv(M, tm_eff)
    gv = pl.cdiv(V, tv_eff)

    out_dtype = x.dtype
    x_bytes = jnp.dtype(x.dtype).itemsize
    w_bytes = jnp.dtype(weight.dtype).itemsize
    o_bytes = jnp.dtype(out_dtype).itemsize

    # Pick the resident operand: the big one should be indexed by the OUTER
    # (slow) grid axis so each of its tiles is DMA'd exactly once; the small
    # one gets re-streamed once per outer step.
    vocab_major = V >= M     # typical LM head: weight (D*V) >> activations (M*D)
    if vocab_major:
        grid = (gv, gm)                                   # vocab outer, rows inner
        x_spec = pl.BlockSpec((tm_eff, D), lambda j, i: (i, 0))
        w_spec = pl.BlockSpec((tv_eff, D), lambda j, i: (j, 0))   # resident per j
        b_spec = pl.BlockSpec((1, tv_eff), lambda j, i: (0, j))
        o_spec = pl.BlockSpec((tm_eff, tv_eff), lambda j, i: (i, j))
        bytes_accessed = (V * D * w_bytes + V * 4          # weight/bias once
                          + gv * M * D * x_bytes           # x re-streamed gv times
                          + M * V * o_bytes)
    else:
        grid = (gm, gv)                                   # rows outer, vocab inner
        x_spec = pl.BlockSpec((tm_eff, D), lambda i, j: (i, 0))   # resident per i
        w_spec = pl.BlockSpec((tv_eff, D), lambda i, j: (j, 0))
        b_spec = pl.BlockSpec((1, tv_eff), lambda i, j: (0, j))
        o_spec = pl.BlockSpec((tm_eff, tv_eff), lambda i, j: (i, j))
        bytes_accessed = (M * D * x_bytes
                          + gm * (V * D * w_bytes + V * 4)  # weight re-streamed gm times
                          + M * V * o_bytes)

    # VMEM budget from actual tile footprint (double-buffered in/out) + slack,
    # rather than a blanket cap.  Keep it bounded for v7x's 64 MiB physical.
    tile_bytes = (tm_eff * D * x_bytes + tv_eff * D * w_bytes
                  + tv_eff * 4 + tm_eff * tv_eff * o_bytes)
    vmem_limit = int(min(max(2 * tile_bytes + (4 << 20), 32 << 20), 100 << 20))

    cost = pl.CostEstimate(
        flops=2 * M * D * V,
        transcendentals=0,
        bytes_accessed=int(bytes_accessed),
    )

    out = pl.pallas_call(
        functools.partial(_lm_head_kernel, precision=precision),
        out_shape=jax.ShapeDtypeStruct((M, V), out_dtype),
        grid=grid,
        in_specs=[x_spec, w_spec, b_spec],
        out_specs=o_spec,
        compiler_params=pltpu.CompilerParams(
            # Both axes are fully independent (full-D contraction per block);
            # the leading axis (vocab in the LM-head regime) gets sharded
            # across v7x's two TensorCores so each core reads half the weight.
            dimension_semantics=("parallel", "parallel"),
            vmem_limit_bytes=vmem_limit,
        ),
        cost_estimate=cost,
    )(x2, weight, b2)

    return out.reshape(B, S, V)


if __name__ == "__main__":
    # Small shapes consistent with the module: batch=2, seq=128,
    # embedding_dim=32, vocab_size=256.
    B, S, D, V = 2, 128, 32, 256
    key = jax.random.PRNGKey(0)
    kx, kw, kb = jax.random.split(key, 3)

    x = jax.random.normal(kx, (B, S, D), dtype=jnp.float32)

    # Deterministic params mirroring nn.Linear's uniform(-1/sqrt(D), 1/sqrt(D)),
    # in torch layout: weight (V, D), bias (V,).
    bound = 1.0 / jnp.sqrt(jnp.float32(D))
    weight = jax.random.uniform(kw, (V, D), dtype=jnp.float32,
                                minval=-bound, maxval=bound)
    bias = jax.random.uniform(kb, (V,), dtype=jnp.float32,
                              minval=-bound, maxval=bound)

    out = next_token_head(x, weight, bias)
    out = jax.block_until_ready(out)

    # Reference: plain JAX per-token linear (matches torch fc1(x)).
    # Note: both paths accumulate in f32 on the MXU; for bitwise-tight parity
    # with a torch f32 reference at large D, pass precision=Precision.HIGHEST.
    ref = jnp.einsum("bsd,vd->bsv", x, weight) + bias
    assert out.shape == (B, S, V)
    assert jnp.allclose(out, ref, atol=1e-4, rtol=1e-4)

    print("KERNEL_OK")
</pallas_src>

<mosaic_0001>
module attributes {stable_mosaic.version = 11 : i64} {
  func.func @_lm_head_kernel(%arg0: i32, %arg1: i32, %arg2: memref<256x32xf32, #tpu.memory_space<vmem>>, %arg3: memref<256x32xf32, #tpu.memory_space<vmem>>, %arg4: memref<1x256xf32, #tpu.memory_space<vmem>>, %arg5: memref<256x256xf32, #tpu.memory_space<vmem>>) attributes {dimension_semantics = [#tpu.dimension_semantics<parallel>, #tpu.dimension_semantics<parallel>], iteration_bounds = array<i64: 1, 1>, scalar_prefetch = 0 : i64, scratch_operands = 0 : i64, tpu.core_type = #tpu.core_type<tc>, window_params = [{transform_indices = @transform_0, window_bounds = array<i64: 256, 32>}, {transform_indices = @transform_1, window_bounds = array<i64: 256, 32>}, {transform_indices = @transform_2, window_bounds = array<i64: 1, 256>}, {transform_indices = @transform_3, window_bounds = array<i64: 256, 256>}]} {
    %c0 = arith.constant 0 : index
    %c0_0 = arith.constant 0 : index
    %0 = vector.load %arg2[%c0, %c0_0] : memref<256x32xf32, #tpu.memory_space<vmem>>, vector<256x32xf32>
    %c0_1 = arith.constant 0 : index
    %c0_2 = arith.constant 0 : index
    %1 = vector.load %arg3[%c0_1, %c0_2] : memref<256x32xf32, #tpu.memory_space<vmem>>, vector<256x32xf32>
    %cst = arith.constant dense<0.000000e+00> : vector<256x256xf32>
    %2 = tpu.matmul %0, %1, %cst {dimension_numbers = #tpu.dot_dimension_numbers<[1], [1], [0], [0], [0, 0, 1, 0], [], []>} : vector<256x32xf32>, vector<256x32xf32>, vector<256x256xf32> -> vector<256x256xf32>
    %c0_3 = arith.constant 0 : index
    %c0_4 = arith.constant 0 : index
    %3 = vector.load %arg4[%c0_3, %c0_4] : memref<1x256xf32, #tpu.memory_space<vmem>>, vector<1x256xf32>
    %4 = vector.broadcast %3 : vector<1x256xf32> to vector<256x256xf32>
    %5 = arith.addf %2, %4 : vector<256x256xf32>
    %c0_5 = arith.constant 0 : index
    %c0_6 = arith.constant 0 : index
    %6 = vector.load %arg5[%c0_5, %c0_6] : memref<256x256xf32, #tpu.memory_space<vmem>>, vector<256x256xf32>
    tpu.vector_store %arg5[%c0_5, %c0_6], %5 {strides = array<i32>} : memref<256x256xf32, #tpu.memory_space<vmem>>, vector<256x256xf32>,
    return
  }
  func.func @transform_0(%arg0: i32, %arg1: i32) -> (i32, i32) {
    %c0_i32 = arith.constant 0 : i32
    %c0_i32_0 = arith.constant 0 : i32
    return %arg1, %c0_i32 : i32, i32
  }
  func.func @transform_1(%arg0: i32, %arg1: i32) -> (i32, i32) {
    %c0_i32 = arith.constant 0 : i32
    %c0_i32_0 = arith.constant 0 : i32
    return %arg0, %c0_i32 : i32, i32
  }
  func.func @transform_2(%arg0: i32, %arg1: i32) -> (i32, i32) {
    %c0_i32 = arith.constant 0 : i32
    %c0_i32_0 = arith.constant 0 : i32
    return %c0_i32, %arg0 : i32, i32
  }
  func.func @transform_3(%arg0: i32, %arg1: i32) -> (i32, i32) {
    %c0_i32 = arith.constant 0 : i32
    return %arg1, %arg0 : i32, i32
  }
}

</mosaic_0001>

<llo_original>
// kernel: next_token_head.1
$region0: #{next_token_head.1}
  #allocation0 [shape = 'u32[]', space=smem, size = 0x4, offset = 0x4, fixed_abs, tag = 'smem constant byte address 0x4 - core index']
  #allocation1 [shape = 'u32[144,128]{1,0:T(1,128)}', space=vmem, size = 0x12000, scoped, tag = 'internal scratch']
  %s0 = inlined_call_operand.vmem [shape: f32[256,32], index: 0, kind: input, shape index: {}]
  %s1 = inlined_call_operand.vmem [shape: f32[256,32], index: 1, kind: input, shape index: {}]
  %s2 = inlined_call_operand.vmem [shape: f32[1,256], index: 2, kind: input, shape index: {}]
  %s3 = inlined_call_operand.hbm [shape: f32[256,256], index: 3, kind: output, shape index: {}]
  %s4 = sld [smem:[#allocation0]]
  $region22: #{next_token_head.1} parent=0
    _
  %s6 = ssub.s32 1, %s4
  %s7 = scalar_select 0, %s6, %s4
  $region1: #{next_token_head.1} parent=0
    #allocation2 [shape = 'u8[262144]{0}', space=vmem, size = 0x40000, scoped, tag = 'output window, operand 0, single buffered']
    #allocation3 [shape = 's32[1]{0}', space=sflag, size = 0x4, scoped, tag = 'scoped memory for next_token_head.1']
    %8 = vsyncpa [#allocation3], 0
    // Predicated region
    $region2: #{next_token_head.1} parent=1 // pred_check
      _
    $region3: #{next_token_head.1} parent=1 // pred_check_branch
      %10 = sbr.rel (0) target = $region5
    $region4: #{next_token_head.1} parent=1 // pred_region
      _
    $region5: #{next_token_head.1} parent=1 // pred_fallthru
      _
    // Predicated region
    $region6: #{next_token_head.1} parent=1 // pred_check
      _
    $region7: #{next_token_head.1} parent=1 // pred_check_branch
      %12 = sbr.rel (0) target = $region9
    $region8: #{next_token_head.1} parent=1 // pred_region
      _
    $region9: #{next_token_head.1} parent=1 // pred_fallthru
      _
    // Predicated region
    $region10: #{next_token_head.1} parent=1 // pred_check
      _
    $region11: #{next_token_head.1} parent=1 // pred_check_branch
      %14 = sbr.rel (0) target = $region13
    $region12: #{next_token_head.1} parent=1 // pred_region
      _
    $region13: #{next_token_head.1} parent=1 // pred_fallthru
      _
    %v15 = vld [vmem:[%s0] sm:$0xff]
    %v16 = vld [vmem:[%s0 + $0x8] sm:$0xff]
    %v17 = vld [vmem:[%s0 + $0x10] sm:$0xff]
    %v18 = vld [vmem:[%s0 + $0x18] sm:$0xff]
    %v19 = vld [vmem:[%s0 + $0x20] sm:$0xff]
    %v20 = vld [vmem:[%s0 + $0x28] sm:$0xff]
    %v21 = vld [vmem:[%s0 + $0x30] sm:$0xff]
    %v22 = vld [vmem:[%s0 + $0x38] sm:$0xff]
    %v23 = vld [vmem:[%s0 + $0x40] sm:$0xff]
    %v24 = vld [vmem:[%s0 + $0x48] sm:$0xff]
    %v25 = vld [vmem:[%s0 + $0x50] sm:$0xff]
    %v26 = vld [vmem:[%s0 + $0x58] sm:$0xff]
    %v27 = vld [vmem:[%s0 + $0x60] sm:$0xff]
    %v28 = vld [vmem:[%s0 + $0x68] sm:$0xff]
    %v29 = vld [vmem:[%s0 + $0x70] sm:$0xff]
    %v30 = vld [vmem:[%s0 + $0x78] sm:$0xff]
    %v31 = vld [vmem:[%s0 + $0x80] sm:$0xff]
    %v32 = vld [vmem:[%s0 + $0x88] sm:$0xff]
    %v33 = vld [vmem:[%s0 + $0x90] sm:$0xff]
    %v34 = vld [vmem:[%s0 + $0x98] sm:$0xff]
    %v35 = vld [vmem:[%s0 + $0xa0] sm:$0xff]
    %v36 = vld [vmem:[%s0 + $0xa8] sm:$0xff]
    %v37 = vld [vmem:[%s0 + $0xb0] sm:$0xff]
    %v38 = vld [vmem:[%s0 + $0xb8] sm:$0xff]
    %v39 = vld [vmem:[%s0 + $0xc0] sm:$0xff]
    %v40 = vld [vmem:[%s0 + $0xc8] sm:$0xff]
    %v41 = vld [vmem:[%s0 + $0xd0] sm:$0xff]
    %v42 = vld [vmem:[%s0 + $0xd8] sm:$0xff]
    %v43 = vld [vmem:[%s0 + $0xe0] sm:$0xff]
    %v44 = vld [vmem:[%s0 + $0xe8] sm:$0xff]
    %v45 = vld [vmem:[%s0 + $0xf0] sm:$0xff]
    %v46 = vld [vmem:[%s0 + $0xf8] sm:$0xff]
    %v47 = vld [vmem:[%s1] sm:$0xff]
    %v48 = vld [vmem:[%s1 + $0x8] sm:$0xff]
    %v49 = vld [vmem:[%s1 + $0x10] sm:$0xff]
    %v50 = vld [vmem:[%s1 + $0x18] sm:$0xff]
    %v51 = vld [vmem:[%s1 + $0x20] sm:$0xff]
    %v52 = vld [vmem:[%s1 + $0x28] sm:$0xff]
    %v53 = vld [vmem:[%s1 + $0x30] sm:$0xff]
    %v54 = vld [vmem:[%s1 + $0x38] sm:$0xff]
    %v55 = vld [vmem:[%s1 + $0x40] sm:$0xff]
    %v56 = vld [vmem:[%s1 + $0x48] sm:$0xff]
    %v57 = vld [vmem:[%s1 + $0x50] sm:$0xff]
    %v58 = vld [vmem:[%s1 + $0x58] sm:$0xff]
    %v59 = vld [vmem:[%s1 + $0x60] sm:$0xff]
    %v60 = vld [vmem:[%s1 + $0x68] sm:$0xff]
    %v61 = vld [vmem:[%s1 + $0x70] sm:$0xff]
    %v62 = vld [vmem:[%s1 + $0x78] sm:$0xff]
    %v63 = vld [vmem:[%s1 + $0x80] sm:$0xff]
    %v64 = vld [vmem:[%s1 + $0x88] sm:$0xff]
    %v65 = vld [vmem:[%s1 + $0x90] sm:$0xff]
    %v66 = vld [vmem:[%s1 + $0x98] sm:$0xff]
    %v67 = vld [vmem:[%s1 + $0xa0] sm:$0xff]
    %v68 = vld [vmem:[%s1 + $0xa8] sm:$0xff]
    %v69 = vld [vmem:[%s1 + $0xb0] sm:$0xff]
    %v70 = vld [vmem:[%s1 + $0xb8] sm:$0xff]
    %v71 = vld [vmem:[%s1 + $0xc0] sm:$0xff]
    %v72 = vld [vmem:[%s1 + $0xc8] sm:$0xff]
    %v73 = vld [vmem:[%s1 + $0xd0] sm:$0xff]
    %v74 = vld [vmem:[%s1 + $0xd8] sm:$0xff]
    %v75 = vld [vmem:[%s1 + $0xe0] sm:$0xff]
    %v76 = vld [vmem:[%s1 + $0xe8] sm:$0xff]
    %v77 = vld [vmem:[%s1 + $0xf0] sm:$0xff]
    %v78 = vld [vmem:[%s1 + $0xf8] sm:$0xff]
    %v79 = vld [vmem:[%s2] sm:$0x3]
    %v81 = vlaneseq
    %v82 = vshrl.u32 %v81, 7
    %v83 = vsub.s32 0, %v82
    %v84 = vrot.slane %v79, %v83
    %v85 = vlaneseq
    %v86 = vshrl.u32 %v85, 7
    %v87 = vsub.s32 1, %v86
    %v88 = vrot.slane %v79, %v87
    %vm91 = vcmask 261120
    %v93 = vsel %vm91, %v15, 0
    %v96 = vsel %vm91, %v16, 0
    %v99 = vsel %vm91, %v17, 0
    %v102 = vsel %vm91, %v18, 0
    %v105 = vsel %vm91, %v19, 0
    %v108 = vsel %vm91, %v20, 0
    %v111 = vsel %vm91, %v21, 0
    %v114 = vsel %vm91, %v22, 0
    %v117 = vsel %vm91, %v23, 0
    %v120 = vsel %vm91, %v24, 0
    %v123 = vsel %vm91, %v25, 0
    %v126 = vsel %vm91, %v26, 0
    %v129 = vsel %vm91, %v27, 0
    %v132 = vsel %vm91, %v28, 0
    %v135 = vsel %vm91, %v29, 0
    %v138 = vsel %vm91, %v30, 0
    %v141 = vsel %vm91, %v31, 0
    %v144 = vsel %vm91, %v32, 0
    %v147 = vsel %vm91, %v33, 0
    %v150 = vsel %vm91, %v34, 0
    %v153 = vsel %vm91, %v35, 0
    %v156 = vsel %vm91, %v36, 0
    %v159 = vsel %vm91, %v37, 0
    %v162 = vsel %vm91, %v38, 0
    %v165 = vsel %vm91, %v39, 0
    %v168 = vsel %vm91, %v40, 0
    %v171 = vsel %vm91, %v41, 0
    %v174 = vsel %vm91, %v42, 0
    %v177 = vsel %vm91, %v43, 0
    %v180 = vsel %vm91, %v44, 0
    %v183 = vsel %vm91, %v45, 0
    %v186 = vsel %vm91, %v46, 0
    %v189 = vsel %vm91, %v47, 0
    %v192 = vsel %vm91, %v48, 0
    %v195 = vsel %vm91, %v49, 0
    %v198 = vsel %vm91, %v50, 0
    %v201 = vsel %vm91, %v51, 0
    %v204 = vsel %vm91, %v52, 0
    %v207 = vsel %vm91, %v53, 0
    %v210 = vsel %vm91, %v54, 0
    %v213 = vsel %vm91, %v55, 0
    %v216 = vsel %vm91, %v56, 0
    %v219 = vsel %vm91, %v57, 0
    %v222 = vsel %vm91, %v58, 0
    %v225 = vsel %vm91, %v59, 0
    %v228 = vsel %vm91, %v60, 0
    %v231 = vsel %vm91, %v61, 0
    %v234 = vsel %vm91, %v62, 0
    %v237 = vsel %vm91, %v63, 0
    %v240 = vsel %vm91, %v64, 0
    %v243 = vsel %vm91, %v65, 0
    %v246 = vsel %vm91, %v66, 0
    %v249 = vsel %vm91, %v67, 0
    %v252 = vsel %vm91, %v68, 0
    %v255 = vsel %vm91, %v69, 0
    %v258 = vsel %vm91, %v70, 0
    %v261 = vsel %vm91, %v71, 0
    %v264 = vsel %vm91, %v72, 0
    %v267 = vsel %vm91, %v73, 0
    %v270 = vsel %vm91, %v74, 0
    %v273 = vsel %vm91, %v75, 0
    %v276 = vsel %vm91, %v76, 0
    %v279 = vsel %vm91, %v77, 0
    %v282 = vsel %vm91, %v78, 0
    %284 = vmatprep.subr.mxu0 0.0
    %285 = vmatpush1.xpose.msra.mxu0 %v189
    %286 = vmatprep.subr.mxu0 0.0
    %287 = vmatpush1.xpose.msra.mxu0 %v192
    %288 = vmatprep.subr.mxu0 0.0
    %289 = vmatpush1.xpose.msra.mxu0 %v195
    %290 = vmatprep.subr.mxu0 0.0
    %291 = vmatpush1.xpose.msra.mxu0 %v198
    %292 = vmatprep.subr.mxu0 0.0
    %293 = vmatpush1.xpose.msra.mxu0 %v201
    %294 = vmatprep.subr.mxu0 0.0
    %295 = vmatpush1.xpose.msra.mxu0 %v204
    %296 = vmatprep.subr.mxu0 0.0
    %297 = vmatpush1.xpose.msra.mxu0 %v207
    %298 = vmatprep.subr.mxu0 0.0
    %299 = vmatpush1.xpose.msra.mxu0 %v210
    %300 = vmatprep.subr.mxu0 0.0
    %301 = vmatpush1.xpose.msra.mxu0 %v213
    %302 = vmatprep.subr.mxu0 0.0
    %303 = vmatpush1.xpose.msra.mxu0 %v216
    %304 = vmatprep.subr.mxu0 0.0
    %305 = vmatpush1.xpose.msra.mxu0 %v219
    %306 = vmatprep.subr.mxu0 0.0
    %307 = vmatpush1.xpose.msra.mxu0 %v222
    %308 = vmatprep.subr.mxu0 0.0
    %309 = vmatpush1.xpose.msra.mxu0 %v225
    %310 = vmatprep.subr.mxu0 0.0
    %311 = vmatpush1.xpose.msra.mxu0 %v228
    %312 = vmatprep.subr.mxu0 0.0
    %313 = vmatpush1.xpose.msra.mxu0 %v231
    %314 = vmatprep.subr.mxu0 0.0
    %315 = vmatpush1.xpose.msra.mxu0 %v234
    %316 = vmatprep.subr.mxu0 0.0
    %317 = vmatpush1.xpose.msra.mxu0 %v237
    %318 = vmatprep.subr.mxu0 0.0
    %319 = vmatpush1.xpose.msra.mxu0 %v240
    %320 = vmatprep.subr.mxu0 0.0
    %321 = vmatpush1.xpose.msra.mxu0 %v243
    %322 = vmatprep.subr.mxu0 0.0
    %323 = vmatpush1.xpose.msra.mxu0 %v246
    %324 = vmatprep.subr.mxu0 0.0
    %325 = vmatpush1.xpose.msra.mxu0 %v249
    %326 = vmatprep.subr.mxu0 0.0
    %327 = vmatpush1.xpose.msra.mxu0 %v252
    %328 = vmatprep.subr.mxu0 0.0
    %329 = vmatpush1.xpose.msra.mxu0 %v255
    %330 = vmatprep.subr.mxu0 0.0
    %331 = vmatpush1.xpose.msra.mxu0 %v258
    %332 = vmatprep.subr.mxu0 0.0
    %333 = vmatpush1.xpose.msra.mxu0 %v261
    %334 = vmatprep.subr.mxu0 0.0
    %335 = vmatpush1.xpose.msra.mxu0 %v264
    %336 = vmatprep.subr.mxu0 0.0
    %337 = vmatpush1.xpose.msra.mxu0 %v267
    %338 = vmatprep.subr.mxu0 0.0
    %339 = vmatpush1.xpose.msra.mxu0 %v270
    %340 = vmatprep.subr.mxu0 0.0
    %341 = vmatpush1.xpose.msra.mxu0 %v273
    %342 = vmatprep.subr.mxu0 0.0
    %343 = vmatpush1.xpose.msra.mxu0 %v276
    %344 = vmatprep.subr.mxu0 0.0
    %345 = vmatpush1.xpose.msra.mxu0 %v279
    %346 = vmatprep.subr.mxu0 0.0
    %347 = vmatpush1.xpose.msra.mxu0 %v282
    %348 = vmatprep.mubr.f32.mxu0 0.0
    %349 = vmatmul.mubr.f32.gmra.mrb[0].mxu0 %v93
    %v350 = vpop.f32.mrb[0].mxu0
    %v351 = vadd.f32 %v84, %v350
    %v352 = vpop.f32.mrb[0].mxu0
    %v353 = vadd.f32 %v88, %v352
    %354 = vmatprep.mubr.f32.mxu0 0.0
    %355 = vmatmul.mubr.f32.gmra.mrb[0].mxu0 %v96
    %v356 = vpop.f32.mrb[0].mxu0
    %v357 = vadd.f32 %v84, %v356
    %v358 = vpop.f32.mrb[0].mxu0
    %v359 = vadd.f32 %v88, %v358
    %360 = vmatprep.mubr.f32.mxu0 0.0
    %361 = vmatmul.mubr.f32.gmra.mrb[0].mxu0 %v99
    %v362 = vpop.f32.mrb[0].mxu0
    %v363 = vadd.f32 %v84, %v362
    %v364 = vpop.f32.mrb[0].mxu0
    %v365 = vadd.f32 %v88, %v364
    %366 = vmatprep.mubr.f32.mxu0 0.0
    %367 = vmatmul.mubr.f32.gmra.mrb[0].mxu0 %v102
    %v368 = vpop.f32.mrb[0].mxu0
    %v369 = vadd.f32 %v84, %v368
    %v370 = vpop.f32.mrb[0].mxu0
    %v371 = vadd.f32 %v88, %v370
    %372 = vmatprep.mubr.f32.mxu0 0.0
    %373 = vmatmul.mubr.f32.gmra.mrb[0].mxu0 %v105
    %v374 = vpop.f32.mrb[0].mxu0
    %v375 = vadd.f32 %v84, %v374
    %v376 = vpop.f32.mrb[0].mxu0
    %v377 = vadd.f32 %v88, %v376
    %378 = vmatprep.mubr.f32.mxu0 0.0
    %379 = vmatmul.mubr.f32.gmra.mrb[0].mxu0 %v108
    %v380 = vpop.f32.mrb[0].mxu0
    %v381 = vadd.f32 %v84, %v380
    %v382 = vpop.f32.mrb[0].mxu0
    %v383 = vadd.f32 %v88, %v382
    %384 = vmatprep.mubr.f32.mxu0 0.0
    %385 = vmatmul.mubr.f32.gmra.mrb[0].mxu0 %v111
    %v386 = vpop.f32.mrb[0].mxu0
    %v387 = vadd.f32 %v84, %v386
    %v388 = vpop.f32.mrb[0].mxu0
    %v389 = vadd.f32 %v88, %v388
    %390 = vmatprep.mubr.f32.mxu0 0.0
    %391 = vmatmul.mubr.f32.gmra.mrb[0].mxu0 %v114
    %v392 = vpop.f32.mrb[0].mxu0
    %v393 = vadd.f32 %v84, %v392
    %v394 = vpop.f32.mrb[0].mxu0
    %v395 = vadd.f32 %v88, %v394
    %396 = vmatprep.mubr.f32.mxu0 0.0
    %397 = vmatmul.mubr.f32.gmra.mrb[0].mxu0 %v117
    %v398 = vpop.f32.mrb[0].mxu0
    %v399 = vadd.f32 %v84, %v398
    %v400 = vpop.f32.mrb[0].mxu0
    %v401 = vadd.f32 %v88, %v400
    %402 = vmatprep.mubr.f32.mxu0 0.0
    %403 = vmatmul.mubr.f32.gmra.mrb[0].mxu0 %v120
    %v404 = vpop.f32.mrb[0].mxu0
    %v405 = vadd.f32 %v84, %v404
    %v406 = vpop.f32.mrb[0].mxu0
    %v407 = vadd.f32 %v88, %v406
    %408 = vmatprep.mubr.f32.mxu0 0.0
    %409 = vmatmul.mubr.f32.gmra.mrb[0].mxu0 %v123
    %v410 = vpop.f32.mrb[0].mxu0
    %v411 = vadd.f32 %v84, %v410
    %v412 = vpop.f32.mrb[0].mxu0
    %v413 = vadd.f32 %v88, %v412
    %414 = vmatprep.mubr.f32.mxu0 0.0
    %415 = vmatmul.mubr.f32.gmra.mrb[0].mxu0 %v126
    %v416 = vpop.f32.mrb[0].mxu0
    %v417 = vadd.f32 %v84, %v416
    %v418 = vpop.f32.mrb[0].mxu0
    %v419 = vadd.f32 %v88, %v418
    %420 = vmatprep.mubr.f32.mxu0 0.0
    %421 = vmatmul.mubr.f32.gmra.mrb[0].mxu0 %v129
    %v422 = vpop.f32.mrb[0].mxu0
    %v423 = vadd.f32 %v84, %v422
    %v424 = vpop.f32.mrb[0].mxu0
    %v425 = vadd.f32 %v88, %v424
    %426 = vmatprep.mubr.f32.mxu0 0.0
    %427 = vmatmul.mubr.f32.gmra.mrb[0].mxu0 %v132
    %v428 = vpop.f32.mrb[0].mxu0
    %v429 = vadd.f32 %v84, %v428
    %v430 = vpop.f32.mrb[0].mxu0
    %v431 = vadd.f32 %v88, %v430
    %432 = vmatprep.mubr.f32.mxu0 0.0
    %433 = vmatmul.mubr.f32.gmra.mrb[0].mxu0 %v135
    %v434 = vpop.f32.mrb[0].mxu0
    %v435 = vadd.f32 %v84, %v434
    %v436 = vpop.f32.mrb[0].mxu0
    %v437 = vadd.f32 %v88, %v436
    %438 = vmatprep.mubr.f32.mxu0 0.0
    %439 = vmatmul.mubr.f32.gmra.mrb[0].mxu0 %v138
    %v440 = vpop.f32.mrb[0].mxu0
    %v441 = vadd.f32 %v84, %v440
    %v442 = vpop.f32.mrb[0].mxu0
    %v443 = vadd.f32 %v88, %v442
    %444 = vmatprep.mubr.f32.mxu0 0.0
    %445 = vmatmul.mubr.f32.gmra.mrb[0].mxu0 %v141
    %v446 = vpop.f32.mrb[0].mxu0
    %v447 = vadd.f32 %v84, %v446
    %v448 = vpop.f32.mrb[0].mxu0
    %v449 = vadd.f32 %v88, %v448
    %450 = vmatprep.mubr.f32.mxu0 0.0
    %451 = vmatmul.mubr.f32.gmra.mrb[0].mxu0 %v144
    %v452 = vpop.f32.mrb[0].mxu0
    %v453 = vadd.f32 %v84, %v452
    %v454 = vpop.f32.mrb[0].mxu0
    %v455 = vadd.f32 %v88, %v454
    %456 = vmatprep.mubr.f32.mxu0 0.0
    %457 = vmatmul.mubr.f32.gmra.mrb[0].mxu0 %v147
    %v458 = vpop.f32.mrb[0].mxu0
    %v459 = vadd.f32 %v84, %v458
    %v460 = vpop.f32.mrb[0].mxu0
    %v461 = vadd.f32 %v88, %v460
    %462 = vmatprep.mubr.f32.mxu0 0.0
    %463 = vmatmul.mubr.f32.gmra.mrb[0].mxu0 %v150
    %v464 = vpop.f32.mrb[0].mxu0
    %v465 = vadd.f32 %v84, %v464
    %v466 = vpop.f32.mrb[0].mxu0
    %v467 = vadd.f32 %v88, %v466
    %468 = vmatprep.mubr.f32.mxu0 0.0
    %469 = vmatmul.mubr.f32.gmra.mrb[0].mxu0 %v153
    %v470 = vpop.f32.mrb[0].mxu0
    %v471 = vadd.f32 %v84, %v470
    %v472 = vpop.f32.mrb[0].mxu0
    %v473 = vadd.f32 %v88, %v472
    %474 = vmatprep.mubr.f32.mxu0 0.0
    %475 = vmatmul.mubr.f32.gmra.mrb[0].mxu0 %v156
    %v476 = vpop.f32.mrb[0].mxu0
    %v477 = vadd.f32 %v84, %v476
    %v478 = vpop.f32.mrb[0].mxu0
    %v479 = vadd.f32 %v88, %v478
    %480 = vmatprep.mubr.f32.mxu0 0.0
    %481 = vmatmul.mubr.f32.gmra.mrb[0].mxu0 %v159
    %v482 = vpop.f32.mrb[0].mxu0
    %v483 = vadd.f32 %v84, %v482
    %v484 = vpop.f32.mrb[0].mxu0
    %v485 = vadd.f32 %v88, %v484
    %486 = vmatprep.mubr.f32.mxu0 0.0
    %487 = vmatmul.mubr.f32.gmra.mrb[0].mxu0 %v162
    %v488 = vpop.f32.mrb[0].mxu0
    %v489 = vadd.f32 %v84, %v488
    %v490 = vpop.f32.mrb[0].mxu0
    %v491 = vadd.f32 %v88, %v490
    %492 = vmatprep.mubr.f32.mxu0 0.0
    %493 = vmatmul.mubr.f32.gmra.mrb[0].mxu0 %v165
    %v494 = vpop.f32.mrb[0].mxu0
    %v495 = vadd.f32 %v84, %v494
    %v496 = vpop.f32.mrb[0].mxu0
    %v497 = vadd.f32 %v88, %v496
    %498 = vmatprep.mubr.f32.mxu0 0.0
    %499 = vmatmul.mubr.f32.gmra.mrb[0].mxu0 %v168
    %v500 = vpop.f32.mrb[0].mxu0
    %v501 = vadd.f32 %v84, %v500
    %v502 = vpop.f32.mrb[0].mxu0
    %v503 = vadd.f32 %v88, %v502
    %504 = vmatprep.mubr.f32.mxu0 0.0
    %505 = vmatmul.mubr.f32.gmra.mrb[0].mxu0 %v171
    %v506 = vpop.f32.mrb[0].mxu0
    %v507 = vadd.f32 %v84, %v506
    %v508 = vpop.f32.mrb[0].mxu0
    %v509 = vadd.f32 %v88, %v508
    %510 = vmatprep.mubr.f32.mxu0 0.0
    %511 = vmatmul.mubr.f32.gmra.mrb[0].mxu0 %v174
    %v512 = vpop.f32.mrb[0].mxu0
    %v513 = vadd.f32 %v84, %v512
    %v514 = vpop.f32.mrb[0].mxu0
    %v515 = vadd.f32 %v88, %v514
    %516 = vmatprep.mubr.f32.mxu0 0.0
    %517 = vmatmul.mubr.f32.gmra.mrb[0].mxu0 %v177
    %v518 = vpop.f32.mrb[0].mxu0
    %v519 = vadd.f32 %v84, %v518
    %v520 = vpop.f32.mrb[0].mxu0
    %v521 = vadd.f32 %v88, %v520
    %522 = vmatprep.mubr.f32.mxu0 0.0
    %523 = vmatmul.mubr.f32.gmra.mrb[0].mxu0 %v180
    %v524 = vpop.f32.mrb[0].mxu0
    %v525 = vadd.f32 %v84, %v524
    %v526 = vpop.f32.mrb[0].mxu0
    %v527 = vadd.f32 %v88, %v526
    %528 = vmatprep.mubr.f32.mxu0 0.0
    %529 = vmatmul.mubr.f32.gmra.mrb[0].mxu0 %v183
    %v530 = vpop.f32.mrb[0].mxu0
    %v531 = vadd.f32 %v84, %v530
    %v532 = vpop.f32.mrb[0].mxu0
    %v533 = vadd.f32 %v88, %v532
    %534 = vmatprep.mubr.f32.mxu0 0.0
    %535 = vmatmul.mubr.f32.gmra.mrb[0].mxu0 %v186
    %v536 = vpop.f32.mrb[0].mxu0
    %v537 = vadd.f32 %v84, %v536
    %v538 = vpop.f32.mrb[0].mxu0
    %v539 = vadd.f32 %v88, %v538
    %540 = vdwg.mxu0
    %541 = vst [vmem:[#allocation2] sm:$0xff] %v351
    %542 = vst [vmem:[#allocation2 + $0x8] sm:$0xff] %v353
    %543 = vst [vmem:[#allocation2 + $0x10] sm:$0xff] %v357
    %544 = vst [vmem:[#allocation2 + $0x18] sm:$0xff] %v359
    %545 = vst [vmem:[#allocation2 + $0x20] sm:$0xff] %v363
    %546 = vst [vmem:[#allocation2 + $0x28] sm:$0xff] %v365
    %547 = vst [vmem:[#allocation2 + $0x30] sm:$0xff] %v369
    %548 = vst [vmem:[#allocation2 + $0x38] sm:$0xff] %v371
    %549 = vst [vmem:[#allocation2 + $0x40] sm:$0xff] %v375
    %550 = vst [vmem:[#allocation2 + $0x48] sm:$0xff] %v377
    %551 = vst [vmem:[#allocation2 + $0x50] sm:$0xff] %v381
    %552 = vst [vmem:[#allocation2 + $0x58] sm:$0xff] %v383
    %553 = vst [vmem:[#allocation2 + $0x60] sm:$0xff] %v387
    %554 = vst [vmem:[#allocation2 + $0x68] sm:$0xff] %v389
    %555 = vst [vmem:[#allocation2 + $0x70] sm:$0xff] %v393
    %556 = vst [vmem:[#allocation2 + $0x78] sm:$0xff] %v395
    %557 = vst [vmem:[#allocation2 + $0x80] sm:$0xff] %v399
    %558 = vst [vmem:[#allocation2 + $0x88] sm:$0xff] %v401
    %559 = vst [vmem:[#allocation2 + $0x90] sm:$0xff] %v405
    %560 = vst [vmem:[#allocation2 + $0x98] sm:$0xff] %v407
    %561 = vst [vmem:[#allocation2 + $0xa0] sm:$0xff] %v411
    %562 = vst [vmem:[#allocation2 + $0xa8] sm:$0xff] %v413
    %563 = vst [vmem:[#allocation2 + $0xb0] sm:$0xff] %v417
    %564 = vst [vmem:[#allocation2 + $0xb8] sm:$0xff] %v419
    %565 = vst [vmem:[#allocation2 + $0xc0] sm:$0xff] %v423
    %566 = vst [vmem:[#allocation2 + $0xc8] sm:$0xff] %v425
    %567 = vst [vmem:[#allocation2 + $0xd0] sm:$0xff] %v429
    %568 = vst [vmem:[#allocation2 + $0xd8] sm:$0xff] %v431
    %569 = vst [vmem:[#allocation2 + $0xe0] sm:$0xff] %v435
    %570 = vst [vmem:[#allocation2 + $0xe8] sm:$0xff] %v437
    %571 = vst [vmem:[#allocation2 + $0xf0] sm:$0xff] %v441
    %572 = vst [vmem:[#allocation2 + $0xf8] sm:$0xff] %v443
    %573 = vst [vmem:[#allocation2 + $0x100] sm:$0xff] %v447
    %574 = vst [vmem:[#allocation2 + $0x108] sm:$0xff] %v449
    %575 = vst [vmem:[#allocation2 + $0x110] sm:$0xff] %v453
    %576 = vst [vmem:[#allocation2 + $0x118] sm:$0xff] %v455
    %577 = vst [vmem:[#allocation2 + $0x120] sm:$0xff] %v459
    %578 = vst [vmem:[#allocation2 + $0x128] sm:$0xff] %v461
    %579 = vst [vmem:[#allocation2 + $0x130] sm:$0xff] %v465
    %580 = vst [vmem:[#allocation2 + $0x138] sm:$0xff] %v467
    %581 = vst [vmem:[#allocation2 + $0x140] sm:$0xff] %v471
    %582 = vst [vmem:[#allocation2 + $0x148] sm:$0xff] %v473
    %583 = vst [vmem:[#allocation2 + $0x150] sm:$0xff] %v477
    %584 = vst [vmem:[#allocation2 + $0x158] sm:$0xff] %v479
    %585 = vst [vmem:[#allocation2 + $0x160] sm:$0xff] %v483
    %586 = vst [vmem:[#allocation2 + $0x168] sm:$0xff] %v485
    %587 = vst [vmem:[#allocation2 + $0x170] sm:$0xff] %v489
    %588 = vst [vmem:[#allocation2 + $0x178] sm:$0xff] %v491
    %589 = vst [vmem:[#allocation2 + $0x180] sm:$0xff] %v495
    %590 = vst [vmem:[#allocation2 + $0x188] sm:$0xff] %v497
    %591 = vst [vmem:[#allocation2 + $0x190] sm:$0xff] %v501
    %592 = vst [vmem:[#allocation2 + $0x198] sm:$0xff] %v503
    %593 = vst [vmem:[#allocation2 + $0x1a0] sm:$0xff] %v507
    %594 = vst [vmem:[#allocation2 + $0x1a8] sm:$0xff] %v509
    %595 = vst [vmem:[#allocation2 + $0x1b0] sm:$0xff] %v513
    %596 = vst [vmem:[#allocation2 + $0x1b8] sm:$0xff] %v515
    %597 = vst [vmem:[#allocation2 + $0x1c0] sm:$0xff] %v519
    %598 = vst [vmem:[#allocation2 + $0x1c8] sm:$0xff] %v521
    %599 = vst [vmem:[#allocation2 + $0x1d0] sm:$0xff] %v525
    %600 = vst [vmem:[#allocation2 + $0x1d8] sm:$0xff] %v527
    %601 = vst [vmem:[#allocation2 + $0x1e0] sm:$0xff] %v531
    %602 = vst [vmem:[#allocation2 + $0x1e8] sm:$0xff] %v533
    %603 = vst [vmem:[#allocation2 + $0x1f0] sm:$0xff] %v537
    %604 = vst [vmem:[#allocation2 + $0x1f8] sm:$0xff] %v539
    // Predicated region
    $region14: #{next_token_head.1} parent=1 // pred_check
      _
    $region15: #{next_token_head.1} parent=1 // pred_check_branch
      %606 = sbr.rel (0) target = $region17
    $region16: #{next_token_head.1} parent=1 // pred_region
      %s608 = ssub.s32 8192, 8192
      %609 = vsyncadd [#allocation3], %s608
      %s610 = sshll.u32 [#allocation2], 4
      %s611 = int_to_ptr.vmem [resolvable:$true] %s610
      %616 = dma.vmem_to_hbm [thread:$0]  %s611, 8192, %s3, [#allocation3], 256, 256, 16
    $region17: #{next_token_head.1} parent=1 // pred_fallthru
      _
    // Predicated region
    $region18: #{next_token_head.1} parent=1 // pred_check
      _
    $region19: #{next_token_head.1} parent=1 // pred_check_branch
      %618 = sbr.rel (0) target = $region21
    $region20: #{next_token_head.1} parent=1 // pred_region
      %619 = dma.done [#allocation3], 8192
    $region21: #{next_token_head.1} parent=1 // pred_fallthru
      _
    %620 = vsyncpa [#allocation3], 1

</llo_original>
